<compile_context>
chip_gen: v6e
topology: v6e:2x2x1
jax: 0.10.0
libtpu: 0.0.40
codegen_flags: <defaults>
</compile_context>

<pallas_src>
import functools

import jax
import jax.numpy as jnp
from jax.experimental import pallas as pl
from jax.experimental.pallas import tpu as pltpu


def _round_up(x: int, m: int) -> int:
    return (x + m - 1) // m * m


def _pow_static(x, p: float):
    """x ** p for a static, positive p without the generic log+exp path."""
    if p == 1.0:
        return x
    if p > 0 and float(p).is_integer() and p <= 8.0:
        out = x
        for _ in range(int(p) - 1):
            out = out * x
        return out
    if p > 0 and float(2.0 * p).is_integer() and p <= 8.0:
        # half-integer power: x**p = sqrt(x) * x**floor(p)
        out = jnp.sqrt(x)
        for _ in range(int(p)):
            out = out * x
        return out
    return x ** p


def _cluster_assign_kernel(x_ref, ct_ref, csq_ref, o_ref, *, alpha: float,
                           power: float, k_actual: int):
    x = x_ref[...].astype(jnp.float32)       # [TB, D]  (native dtype in HBM)
    ct = ct_ref[...]                         # [D, Kp]  pre-transposed centers
    c_sq = csq_ref[...]                      # [1, Kp]  ||c||^2 (1e30 on padding)

    # MXU matmul with contraction over the embedding dim; no in-kernel c.T.
    xc = jnp.dot(x, ct, preferred_element_type=jnp.float32)     # [TB, Kp]
    x_sq = jnp.sum(x * x, axis=-1, keepdims=True)               # [TB, 1]
    # Distances are >= 0 mathematically; clamp the f32 cancellation noise.
    norm_sq = jnp.maximum(x_sq - 2.0 * xc + c_sq, 0.0)          # [TB, Kp]

    # Student's-t numerator.  Padded clusters have norm_sq ~ 1e30 -> ~0 here,
    # so they contribute nothing to the row sum (no iota/where masking needed).
    numerator = 1.0 / (1.0 + norm_sq * (1.0 / alpha))
    numerator = _pow_static(numerator, power)                   # skipped if p==1

    denom = jnp.sum(numerator, axis=-1, keepdims=True)          # [TB, 1]
    out = numerator / denom                                     # exact: rows sum to 1

    # Lane-narrow store: only the K real clusters are written back to HBM.
    o_ref[...] = out[:, :k_actual].astype(o_ref.dtype)


def cluster_assignment(batch: jax.Array, cluster_centers: jax.Array,
                       alpha: float = 1.0) -> jax.Array:
    """batch: [B, D], cluster_centers: [K, D] -> soft assignment [B, K] f32."""
    B, D = batch.shape
    K, D2 = cluster_centers.shape
    assert D == D2, "embedding dim mismatch"

    Kp = _round_up(K, 128)                   # lane-dense compute width
    power = (float(alpha) + 1.0) / 2.0

    # Resident prep (tiny, once): transpose + pad centers, precompute ||c||^2.
    c_t = jnp.transpose(cluster_centers.astype(jnp.float32))    # [D, K]
    c_sq = jnp.sum(c_t * c_t, axis=0, keepdims=True)            # [1, K]
    if Kp != K:
        c_t = jnp.pad(c_t, ((0, 0), (0, Kp - K)))               # zeros -> xc = 0
        c_sq = jnp.pad(c_sq, ((0, 0), (0, Kp - K)),
                       constant_values=1e30)                    # -> numerator ~ 0

    in_bytes = jnp.dtype(batch.dtype).itemsize

    # Per-generation VMEM budget (per TensorCore): v7x 64 MiB, v5e/v6e 128 MiB.
    try:
        vmem_cap = int(pltpu.get_tpu_info().vmem_capacity_bytes)
    except Exception:                        # interpret mode / unknown device
        vmem_cap = 64 << 20
    budget = int(vmem_cap * 0.70)            # ~45 MiB on v7x, ~90 MiB on v5e/v6e

    # Footprint model: double-buffered x and out tiles, resident centers
    # (counted double-buffered to be safe) plus compiler-materialized f32
    # temporaries (~5 [TB,Kp] live values + the f32 upcast of the x tile).
    fixed_bytes = 2 * (D * Kp + Kp) * 4
    per_row = (2 * D * in_bytes              # x tile (double-buffered, native dtype)
               + 2 * Kp * 4                  # out tile (lane-padded in VMEM)
               + 5 * Kp * 4 + D * 4)         # in-kernel temporaries
    max_rows = max(8, (budget - fixed_bytes) // per_row)
    TB = int(min(_round_up(B, 8), (max_rows // 8) * 8))
    TB = max(TB, 8)
    grid = (pl.cdiv(B, TB),)                 # no wrapper-side batch pad

    est_bytes = fixed_bytes + TB * per_row
    vmem_limit = int(min(vmem_cap - (1 << 20), max(2 * est_bytes, 16 << 20)))
    vmem_limit = max(vmem_limit, 8 << 20)

    cost = pl.CostEstimate(
        flops=int(2 * B * K * D + 10 * B * K),
        transcendentals=int(B * K if power != 1.0 else 0),
        bytes_accessed=int(B * D * in_bytes + D * K * 4 + K * 4 + B * K * 4),
    )

    out = pl.pallas_call(
        functools.partial(_cluster_assign_kernel, alpha=float(alpha),
                          power=power, k_actual=K),
        out_shape=jax.ShapeDtypeStruct((B, K), jnp.float32),
        grid_spec=pltpu.PrefetchScalarGridSpec(
            num_scalar_prefetch=0,
            grid=grid,
            in_specs=[
                pl.BlockSpec((TB, D), lambda i: (i, 0)),    # batch tile (pipelined)
                pl.BlockSpec((D, Kp), lambda i: (0, 0)),    # centers: VMEM-resident
                pl.BlockSpec((1, Kp), lambda i: (0, 0)),    # ||c||^2: VMEM-resident
            ],
            out_specs=pl.BlockSpec((TB, K), lambda i: (i, 0)),
        ),
        compiler_params=pltpu.CompilerParams(
            dimension_semantics=("parallel",),              # megacore-shardable
            vmem_limit_bytes=vmem_limit,
        ),
        cost_estimate=cost,
    )(batch, c_t, c_sq)

    return out


def _reference(batch, centers, alpha=1.0):
    # Pure-JAX reference mirroring the PyTorch forward exactly.
    diff = batch[:, None, :].astype(jnp.float32) - centers[None, :, :].astype(jnp.float32)
    norm_sq = jnp.sum(diff * diff, axis=2)
    num = 1.0 / (1.0 + norm_sq / alpha)
    num = num ** ((alpha + 1.0) / 2.0)
    return num / jnp.sum(num, axis=1, keepdims=True)


def xavier_uniform(key, shape):
    # nn.init.xavier_uniform_ on a [K, D] tensor: fan_in=D, fan_out=K, gain=1.
    fan_out, fan_in = shape
    bound = (6.0 / (fan_in + fan_out)) ** 0.5
    return jax.random.uniform(key, shape, jnp.float32, -bound, bound)


if __name__ == "__main__":
    key = jax.random.PRNGKey(0)

    # Exact f32 arithmetic in the kernel: only the ||x||^2-2xc+||c||^2
    # reformulation differs from the reference, so tolerances can stay tight.
    ATOL = RTOL = 2e-3

    # Case 1: module-sized small shapes, default alpha=1 (pow skipped).
    B, D, K, alpha = 8, 32, 16, 1.0
    k_x, k_c, key = jax.random.split(key, 3)
    batch = jax.random.normal(k_x, (B, D), dtype=jnp.float32)
    centers = xavier_uniform(k_c, (K, D))

    out = jax.block_until_ready(cluster_assignment(batch, centers, alpha=alpha))
    ref = _reference(batch, centers, alpha=alpha)
    assert out.shape == (B, K)
    assert jnp.allclose(out, ref, atol=ATOL, rtol=RTOL), "mismatch vs reference"
    assert jnp.allclose(jnp.sum(out, axis=1), jnp.ones((B,)), atol=1e-4)

    # Case 2: non-tile-aligned shapes + alpha != 1 (exercises the cdiv grid
    # edge block, phantom-cluster masking via c_sq, and the sqrt-pow path).
    B2, D2, K2, alpha2 = 300, 96, 20, 2.0
    k_x2, k_c2, key = jax.random.split(key, 3)
    batch2 = jax.random.normal(k_x2, (B2, D2), dtype=jnp.float32)
    centers2 = xavier_uniform(k_c2, (K2, D2))

    out2 = jax.block_until_ready(
        cluster_assignment(batch2, centers2, alpha=alpha2))
    ref2 = _reference(batch2, centers2, alpha=alpha2)
    assert out2.shape == (B2, K2)
    assert jnp.allclose(out2, ref2, atol=ATOL, rtol=RTOL), "mismatch (case 2)"
    assert jnp.allclose(jnp.sum(out2, axis=1), jnp.ones((B2,)), atol=1e-4)

    print("KERNEL_OK")
</pallas_src>

<mosaic_0001>
module attributes {stable_mosaic.version = 11 : i64} {
  func.func @_cluster_assign_kernel(%arg0: i32, %arg1: memref<8x32xf32, #tpu.memory_space<vmem>>, %arg2: memref<32x128xf32, #tpu.memory_space<vmem>>, %arg3: memref<1x128xf32, #tpu.memory_space<vmem>>, %arg4: memref<8x16xf32, #tpu.memory_space<vmem>>) attributes {dimension_semantics = [#tpu.dimension_semantics<parallel>], iteration_bounds = array<i64: 1>, scalar_prefetch = 0 : i64, scratch_operands = 0 : i64, tpu.core_type = #tpu.core_type<tc>, window_params = [{transform_indices = @transform_0, window_bounds = array<i64: 8, 32>}, {pipeline_mode = #tpu.pipeline_mode<synchronous>, transform_indices = @transform_1, window_bounds = array<i64: 32, 128>}, {pipeline_mode = #tpu.pipeline_mode<synchronous>, transform_indices = @transform_2, window_bounds = array<i64: 1, 128>}, {transform_indices = @transform_3, window_bounds = array<i64: 8, 16>}]} {
    %c0 = arith.constant 0 : index
    %c0_0 = arith.constant 0 : index
    %0 = vector.load %arg1[%c0, %c0_0] : memref<8x32xf32, #tpu.memory_space<vmem>>, vector<8x32xf32>
    %c0_1 = arith.constant 0 : index
    %c0_2 = arith.constant 0 : index
    %1 = vector.load %arg2[%c0_1, %c0_2] : memref<32x128xf32, #tpu.memory_space<vmem>>, vector<32x128xf32>
    %c0_3 = arith.constant 0 : index
    %c0_4 = arith.constant 0 : index
    %2 = vector.load %arg3[%c0_3, %c0_4] : memref<1x128xf32, #tpu.memory_space<vmem>>, vector<1x128xf32>
    %cst = arith.constant dense<0.000000e+00> : vector<8x128xf32>
    %3 = tpu.matmul %0, %1, %cst {dimension_numbers = #tpu.dot_dimension_numbers<[1], [0], [0], [1], [0, 0, 1, 1], [], []>} : vector<8x32xf32>, vector<32x128xf32>, vector<8x128xf32> -> vector<8x128xf32>
    %4 = arith.mulf %0, %0 : vector<8x32xf32>
    %cst_5 = arith.constant dense<0.000000e+00> : vector<8xf32>
    %5 = vector.multi_reduction <add>, %4, %cst_5 [1] : vector<8x32xf32> to vector<8xf32>
    %6 = vector.shape_cast %5 : vector<8xf32> to vector<8x1xf32>
    %cst_6 = arith.constant 2.000000e+00 : f32
    %7 = vector.broadcast %cst_6 : f32 to vector<8x128xf32>
    %8 = arith.mulf %7, %3 : vector<8x128xf32>
    %9 = vector.broadcast %6 : vector<8x1xf32> to vector<8x128xf32>
    %10 = arith.subf %9, %8 : vector<8x128xf32>
    %11 = vector.broadcast %2 : vector<1x128xf32> to vector<8x128xf32>
    %12 = arith.addf %10, %11 : vector<8x128xf32>
    %cst_7 = arith.constant 0.000000e+00 : f32
    %13 = vector.broadcast %cst_7 : f32 to vector<8x128xf32>
    %14 = arith.maximumf %12, %13 : vector<8x128xf32>
    %cst_8 = arith.constant 1.000000e+00 : f32
    %15 = vector.broadcast %cst_8 : f32 to vector<8x128xf32>
    %16 = arith.mulf %14, %15 : vector<8x128xf32>
    %cst_9 = arith.constant 1.000000e+00 : f32
    %17 = vector.broadcast %cst_9 : f32 to vector<8x128xf32>
    %18 = arith.addf %17, %16 : vector<8x128xf32>
    %cst_10 = arith.constant 1.000000e+00 : f32
    %19 = vector.broadcast %cst_10 : f32 to vector<8x128xf32>
    %20 = arith.divf %19, %18 : vector<8x128xf32>
    %cst_11 = arith.constant dense<0.000000e+00> : vector<8xf32>
    %21 = vector.multi_reduction <add>, %20, %cst_11 [1] : vector<8x128xf32> to vector<8xf32>
    %22 = vector.shape_cast %21 : vector<8xf32> to vector<8x1xf32>
    %23 = vector.broadcast %22 : vector<8x1xf32> to vector<8x128xf32>
    %24 = arith.divf %20, %23 : vector<8x128xf32>
    %25 = vector.extract_strided_slice %24 {offsets = [0, 0], sizes = [8, 16], strides = [1, 1]} : vector<8x128xf32> to vector<8x16xf32>
    %c0_12 = arith.constant 0 : index
    %c0_13 = arith.constant 0 : index
    %26 = vector.load %arg4[%c0_12, %c0_13] : memref<8x16xf32, #tpu.memory_space<vmem>>, vector<8x16xf32>
    tpu.vector_store %arg4[%c0_12, %c0_13], %25 {strides = array<i32>} : memref<8x16xf32, #tpu.memory_space<vmem>>, vector<8x16xf32>,
    return
  }
  func.func @transform_0(%arg0: i32) -> (i32, i32) {
    %c0_i32 = arith.constant 0 : i32
    %c0_i32_0 = arith.constant 0 : i32
    return %arg0, %c0_i32 : i32, i32
  }
  func.func @transform_1(%arg0: i32) -> (i32, i32) {
    %c0_i32 = arith.constant 0 : i32
    %c0_i32_0 = arith.constant 0 : i32
    %c0_i32_1 = arith.constant 0 : i32
    return %c0_i32, %c0_i32_0 : i32, i32
  }
  func.func @transform_2(%arg0: i32) -> (i32, i32) {
    %c0_i32 = arith.constant 0 : i32
    %c0_i32_0 = arith.constant 0 : i32
    %c0_i32_1 = arith.constant 0 : i32
    return %c0_i32, %c0_i32_0 : i32, i32
  }
  func.func @transform_3(%arg0: i32) -> (i32, i32) {
    %c0_i32 = arith.constant 0 : i32
    %c0_i32_0 = arith.constant 0 : i32
    return %arg0, %c0_i32 : i32, i32
  }
}

</mosaic_0001>

<llo_original>
// kernel: tpu_custom_call.1
$region0: #{tpu_custom_call.1}
  #allocation0 [shape = 'u32[]', space=smem, size = 0x4, offset = 0x4, fixed_abs, tag = 'smem constant byte address 0x4 - core index']
  #allocation1 [shape = 'u32[144,128]{1,0:T(1,128)}', space=vmem, size = 0x12000, scoped, tag = 'internal scratch']
  %s0 = inlined_call_operand.hbm [shape: f32[8,32], index: 0, kind: input, shape index: {}]
  %s1 = inlined_call_operand.hbm [shape: f32[32,128], index: 1, kind: input, shape index: {}]
  %s2 = inlined_call_operand.vmem [shape: f32[1,128], index: 2, kind: input, shape index: {}]
  %s3 = inlined_call_operand.hbm [shape: f32[8,16], index: 3, kind: output, shape index: {}]
  %s4 = sld [smem:[#allocation0]]
  $region30: #{tpu_custom_call.1} parent=0
    _
  %s6 = ssub.s32 1, %s4
  %s7 = scalar_select 0, %s6, %s4
  $region1: #{tpu_custom_call.1} parent=0
    #allocation2 [shape = 'u8[4096]{0}', space=vmem, size = 0x1000, scoped, tag = 'input window, operand 0, single buffered']
    #allocation3 [shape = 's32[1]{0}', space=sflag, size = 0x4, scoped, tag = 'scoped memory for tpu_custom_call.1']
    #allocation4 [shape = 's32[1]{0}', space=sflag, size = 0x4, scoped, tag = 'scoped memory for tpu_custom_call.1']
    #allocation5 [shape = 'u8[16384]{0}', space=vmem, size = 0x4000, scoped, tag = 'input window, operand 1, single buffered']
    #allocation6 [shape = 's32[1]{0}', space=sflag, size = 0x4, scoped, tag = 'scoped memory for tpu_custom_call.1']
    #allocation7 [shape = 'u8[4096]{0}', space=vmem, size = 0x1000, scoped, tag = 'output window, operand 0, single buffered']
    %8 = vsyncpa [#allocation3], 0
    %9 = vsyncpa [#allocation6], 0
    %10 = vsyncpa [#allocation4], 0
    // Predicated region
    $region2: #{tpu_custom_call.1} parent=1 // pred_check
      _
    $region3: #{tpu_custom_call.1} parent=1 // pred_check_branch
      %12 = sbr.rel (0) target = $region5
    $region4: #{tpu_custom_call.1} parent=1 // pred_region
      %s14 = ssub.s32 128, 128
      %15 = vsyncadd [#allocation3], %s14
      %s17 = sshll.u32 [#allocation2], 4
      %s18 = int_to_ptr.vmem [resolvable:$true] %s17
      %20 = dma.hbm_to_vmem [thread:$0]  %s0, 128, %s18, [#allocation3]
    $region5: #{tpu_custom_call.1} parent=1 // pred_fallthru
      _
    // Predicated region
    $region6: #{tpu_custom_call.1} parent=1 // pred_check
      _
    $region7: #{tpu_custom_call.1} parent=1 // pred_check_branch
      %22 = sbr.rel (0) target = $region9
    $region8: #{tpu_custom_call.1} parent=1 // pred_region
      %s24 = ssub.s32 512, 512
      %25 = vsyncadd [#allocation6], %s24
      %s26 = sshll.u32 [#allocation5], 4
      %s27 = int_to_ptr.vmem [resolvable:$true] %s26
      %32 = dma.hbm_to_vmem [thread:$0]  %s1, 512, %s27, [#allocation6], 128, 128, 8
    $region9: #{tpu_custom_call.1} parent=1 // pred_fallthru
      _
    // Predicated region
    $region10: #{tpu_custom_call.1} parent=1 // pred_check
      _
    $region11: #{tpu_custom_call.1} parent=1 // pred_check_branch
      %34 = sbr.rel (0) target = $region13
    $region12: #{tpu_custom_call.1} parent=1 // pred_region
      _
    $region13: #{tpu_custom_call.1} parent=1 // pred_fallthru
      _
    // Predicated region
    $region14: #{tpu_custom_call.1} parent=1 // pred_check
      _
    $region15: #{tpu_custom_call.1} parent=1 // pred_check_branch
      %36 = sbr.rel (0) target = $region17
    $region16: #{tpu_custom_call.1} parent=1 // pred_region
      %37 = dma.done [#allocation3], 128
    $region17: #{tpu_custom_call.1} parent=1 // pred_fallthru
      _
    // Predicated region
    $region18: #{tpu_custom_call.1} parent=1 // pred_check
      _
    $region19: #{tpu_custom_call.1} parent=1 // pred_check_branch
      %39 = sbr.rel (0) target = $region21
    $region20: #{tpu_custom_call.1} parent=1 // pred_region
      %40 = dma.done [#allocation6], 512
    $region21: #{tpu_custom_call.1} parent=1 // pred_fallthru
      _
    %v41 = vld [vmem:[#allocation2] sm:$0xff]
    %v42 = vld [vmem:[#allocation5] sm:$0xff]
    %v43 = vld [vmem:[#allocation5 + $0x8] sm:$0xff]
    %v44 = vld [vmem:[#allocation5 + $0x10] sm:$0xff]
    %v45 = vld [vmem:[#allocation5 + $0x18] sm:$0xff]
    %v46 = vld [vmem:[%s2] sm:$0x1]
    %vm47 = vcmask 261120
    %v49 = vsel %vm47, %v41, 0
    %51 = vmatprep.subr.mxu0 0.0
    %52 = vmatpush1.msra.mxu0 0.0
    %53 = vmatprep.subr.mxu0 0.0
    %54 = vmatpush1.msra.mxu0 0.0
    %55 = vmatprep.subr.mxu0 0.0
    %56 = vmatpush1.msra.mxu0 0.0
    %57 = vmatprep.subr.mxu0 0.0
    %58 = vmatpush1.msra.mxu0 0.0
    %59 = vmatprep.subr.mxu0 0.0
    %60 = vmatpush1.msra.mxu0 0.0
    %61 = vmatprep.subr.mxu0 0.0
    %62 = vmatpush1.msra.mxu0 0.0
    %63 = vmatprep.subr.mxu0 0.0
    %64 = vmatpush1.msra.mxu0 0.0
    %65 = vmatprep.subr.mxu0 0.0
    %66 = vmatpush1.msra.mxu0 0.0
    %67 = vmatprep.subr.mxu0 0.0
    %68 = vmatpush1.msra.mxu0 0.0
    %69 = vmatprep.subr.mxu0 0.0
    %70 = vmatpush1.msra.mxu0 0.0
    %71 = vmatprep.subr.mxu0 0.0
    %72 = vmatpush1.msra.mxu0 0.0
    %73 = vmatprep.subr.mxu0 0.0
    %74 = vmatpush1.msra.mxu0 0.0
    %75 = vmatprep.subr.mxu0 0.0
    %76 = vmatpush1.msra.mxu0 %v45
    %77 = vmatprep.subr.mxu0 0.0
    %78 = vmatpush1.msra.mxu0 %v44
    %79 = vmatprep.subr.mxu0 0.0
    %80 = vmatpush1.msra.mxu0 %v43
    %81 = vmatprep.subr.mxu0 0.0
    %82 = vmatpush1.msra.mxu0 %v42
    %83 = vmatprep.subr.mxu0 0.0
    %84 = vmatpush2.msra.mxu0 0.0
    %85 = vmatprep.subr.mxu0 0.0
    %86 = vmatpush2.msra.mxu0 0.0
    %87 = vmatprep.subr.mxu0 0.0
    %88 = vmatpush2.msra.mxu0 0.0
    %89 = vmatprep.subr.mxu0 0.0
    %90 = vmatpush2.msra.mxu0 0.0
    %91 = vmatprep.subr.mxu0 0.0
    %92 = vmatpush2.msra.mxu0 0.0
    %93 = vmatprep.subr.mxu0 0.0
    %94 = vmatpush2.msra.mxu0 0.0
    %95 = vmatprep.subr.mxu0 0.0
    %96 = vmatpush2.msra.mxu0 0.0
    %97 = vmatprep.subr.mxu0 0.0
    %98 = vmatpush2.msra.mxu0 0.0
    %99 = vmatprep.subr.mxu0 0.0
    %100 = vmatpush2.msra.mxu0 0.0
    %101 = vmatprep.subr.mxu0 0.0
    %102 = vmatpush2.msra.mxu0 0.0
    %103 = vmatprep.subr.mxu0 0.0
    %104 = vmatpush2.msra.mxu0 0.0
    %105 = vmatprep.subr.mxu0 0.0
    %106 = vmatpush2.msra.mxu0 0.0
    %107 = vmatprep.subr.mxu0 0.0
    %108 = vmatpush2.msra.mxu0 0.0
    %109 = vmatprep.subr.mxu0 0.0
    %110 = vmatpush2.msra.mxu0 0.0
    %111 = vmatprep.subr.mxu0 0.0
    %112 = vmatpush2.msra.mxu0 0.0
    %113 = vmatprep.subr.mxu0 0.0
    %114 = vmatpush2.msra.mxu0 0.0
    %115 = vmatprep.mubr.f32.mxu0 0.0
    %116 = vmatmul.mubr.f32.gmra.mxu0 %v49
    %v117 = vpop.f32.mrf.mxu0
    %v118 = vadd.f32 0.0, %v117
    %v119 = vpop.f32.mrf.mxu0
    %120 = vdwg.mxu0
    %v121 = vmul.f32 %v41, %v41
    %v122 = vsel %vm47, %v121, 0.0
    %123 = vadd.xlane.f32.xlu0 %v122
    %v124 = vpop.xlane.xlu0 %123
    %v125 = vmul.f32 %v118, 2.0
    %v126 = vsub.f32 %v124, %v125
    %v128 = vlaneseq
    %v129 = vshrl.u32 %v128, 7
    %v130 = vsub.s32 0, %v129
    %v131 = vrot.slane %v46, %v130
    %v133 = vadd.f32 %v126, %v131
    %v134 = vmax.f32 %v133, 0.0
    %v135 = vadd.f32 %v134, 1.0
    %v136 = vrcp.pop %v135
    %v137 = vmul.f32 1.0, %v136
    %138 = vadd.xlane.f32.xlu0 %v137
    %v139 = vpop.xlane.xlu0 %138
    %v140 = vrcp.pop %v139
    %v141 = vmul.f32 %v137, %v140
    %vm142 = vcmask 130048
    %143 = vst.msk [vmem:[#allocation7] sm:$0xff] %vm142, %v141
    // Predicated region
    $region22: #{tpu_custom_call.1} parent=1 // pred_check
      _
    $region23: #{tpu_custom_call.1} parent=1 // pred_check_branch
      %145 = sbr.rel (0) target = $region25
    $region24: #{tpu_custom_call.1} parent=1 // pred_region
      %s147 = ssub.s32 128, 128
      %148 = vsyncadd [#allocation4], %s147
      %s150 = sshll.u32 [#allocation7], 4
      %s151 = int_to_ptr.vmem [resolvable:$true] %s150
      %153 = dma.vmem_to_hbm [thread:$0]  %s151, 128, %s3, [#allocation4]
    $region25: #{tpu_custom_call.1} parent=1 // pred_fallthru
      _
    // Predicated region
    $region26: #{tpu_custom_call.1} parent=1 // pred_check
      _
    $region27: #{tpu_custom_call.1} parent=1 // pred_check_branch
      %155 = sbr.rel (0) target = $region29
    $region28: #{tpu_custom_call.1} parent=1 // pred_region
      %156 = dma.done [#allocation4], 128
    $region29: #{tpu_custom_call.1} parent=1 // pred_fallthru
      _
    %157 = vsyncpa [#allocation3], 1
    %158 = vsyncpa [#allocation6], 1
    %159 = vsyncpa [#allocation4], 1

</llo_original>
